<compile_context>
chip_gen: v6e
topology: v6e:2x2x1
jax: 0.10.0
libtpu: 0.0.40
codegen_flags: <defaults>
</compile_context>

<pallas_src>
import functools

import jax
import jax.numpy as jnp
from jax.experimental import pallas as pl
from jax.experimental.pallas import tpu as pltpu

_EPS = 1e-16
_LANES = 128
_SUBLANES = 8


def _ce_partial_kernel(prob_ref, target_ref, partial_ref, *, eps):
    """Reduced ('mean'/'sum') path.

    prob_ref, target_ref : (1, C, S_TILE, 128) VMEM
    partial_ref          : (1, S_TILE, 128)    VMEM, revisited across the
                           spatial grid axis (per-batch accumulator block).
    """
    s = pl.program_id(1)

    @pl.when(s == 0)
    def _():
        partial_ref[...] = jnp.zeros_like(partial_ref)

    p = prob_ref[0].astype(jnp.float32)      # (C, S_TILE, 128)
    t = target_ref[0].astype(jnp.float32)    # (C, S_TILE, 128)
    ce = jnp.sum(-t * jnp.log(p + eps), axis=0)   # (S_TILE, 128), C is a major axis
    partial_ref[0] += ce


def _ce_map_kernel(prob_ref, target_ref, ce_ref, *, eps):
    """'none' path: lane-dense per-pixel CE tile, no reduction, no accumulator."""
    p = prob_ref[0].astype(jnp.float32)      # (C, S_TILE, 128)
    t = target_ref[0].astype(jnp.float32)
    ce_ref[0] = jnp.sum(-t * jnp.log(p + eps), axis=0)   # (S_TILE, 128)


def _choose_s_tile(C, P, target_bytes=1 << 20):
    """Pick the sublane-dim tile so one input block is ~1 MiB (v7x-safe)."""
    s_tile = max(_SUBLANES,
                 (target_bytes // (C * _LANES * 4)) // _SUBLANES * _SUBLANES)
    s_needed = pl.cdiv(P, _LANES)
    s_needed = pl.cdiv(s_needed, _SUBLANES) * _SUBLANES
    return min(s_tile, s_needed)


def _flatten_pad(x, P, P_pad, pad_value):
    """(B, C, H, W) -> lane-dense (B, C, P_pad//128, 128) with padding."""
    B, C = x.shape[0], x.shape[1]
    x = x.reshape(B, C, P)
    if P_pad > P:
        x = jnp.pad(x, ((0, 0), (0, 0), (0, P_pad - P)),
                    constant_values=pad_value)
    return x.reshape(B, C, P_pad // _LANES, _LANES)


def simplex_cross_entropy_loss(prob, target, reduction="mean", eps=_EPS):
    assert prob.shape == target.shape
    assert reduction in ("mean", "sum", "none")
    B, C, H, W = prob.shape
    P = H * W

    s_tile = _choose_s_tile(C, P)
    s_total = pl.cdiv(P, s_tile * _LANES) * s_tile    # spatial rows after padding
    P_pad = s_total * _LANES
    s_grid = s_total // s_tile

    # Padded region: prob=1 (log(1+eps)~0, no NaN), target=0 -> CE contribution
    # is exactly 0, so sums / means over the true count are unaffected.
    prob_r = _flatten_pad(prob, P, P_pad, 1.0)
    target_r = _flatten_pad(target, P, P_pad, 0.0)

    in_specs = [
        pl.BlockSpec((1, C, s_tile, _LANES), lambda b, s: (b, 0, s, 0)),
        pl.BlockSpec((1, C, s_tile, _LANES), lambda b, s: (b, 0, s, 0)),
    ]

    if reduction == "none":
        ce_flat = pl.pallas_call(
            functools.partial(_ce_map_kernel, eps=eps),
            out_shape=jax.ShapeDtypeStruct((B, s_total, _LANES), jnp.float32),
            grid_spec=pltpu.PrefetchScalarGridSpec(
                num_scalar_prefetch=0,
                grid=(B, s_grid),
                in_specs=in_specs,
                out_specs=pl.BlockSpec((1, s_tile, _LANES),
                                       lambda b, s: (b, s, 0)),
            ),
            compiler_params=pltpu.CompilerParams(
                dimension_semantics=("parallel", "parallel"),
            ),
        )(prob_r, target_r)
        return ce_flat.reshape(B, P_pad)[:, :P].reshape(B, H, W)

    # 'mean' / 'sum': only per-batch partial-sum tiles leave the kernel.
    partials = pl.pallas_call(
        functools.partial(_ce_partial_kernel, eps=eps),
        out_shape=jax.ShapeDtypeStruct((B, s_tile, _LANES), jnp.float32),
        grid_spec=pltpu.PrefetchScalarGridSpec(
            num_scalar_prefetch=0,
            grid=(B, s_grid),
            in_specs=in_specs,
            out_specs=pl.BlockSpec((1, s_tile, _LANES),
                                   lambda b, s: (b, 0, 0)),
        ),
        compiler_params=pltpu.CompilerParams(
            # batch axis is independent (megacore-shardable); spatial axis
            # carries the per-batch accumulator block.
            dimension_semantics=("parallel", "arbitrary"),
        ),
    )(prob_r, target_r)

    total = jnp.sum(partials)     # tiny (B * s_tile * 128) reduce in XLA
    if reduction == "mean":
        return total / jnp.float32(B * H * W)
    return total


def _reference(prob, target, reduction="mean", eps=_EPS):
    ce = jnp.sum(-target * jnp.log(prob + eps), axis=1)
    if reduction == "mean":
        return jnp.mean(ce)
    if reduction == "sum":
        return jnp.sum(ce)
    return ce


if __name__ == "__main__":
    B, C, H, W = 2, 4, 16, 16
    key = jax.random.PRNGKey(0)
    k_p, k_t = jax.random.split(key)

    # Deterministic simplex-valued inputs (softmax over the channel axis).
    prob = jax.nn.softmax(
        jax.random.normal(k_p, (B, C, H, W), dtype=jnp.float32), axis=1)
    target = jax.nn.softmax(
        jax.random.normal(k_t, (B, C, H, W), dtype=jnp.float32), axis=1)

    out_mean = simplex_cross_entropy_loss(prob, target, reduction="mean")
    out_sum = simplex_cross_entropy_loss(prob, target, reduction="sum")
    out_none = simplex_cross_entropy_loss(prob, target, reduction="none")
    jax.block_until_ready((out_mean, out_sum, out_none))

    ref_mean = _reference(prob, target, "mean")
    ref_sum = _reference(prob, target, "sum")
    ref_none = _reference(prob, target, "none")

    assert out_none.shape == (B, H, W)
    assert jnp.allclose(out_mean, ref_mean, rtol=1e-5, atol=1e-5)
    assert jnp.allclose(out_sum, ref_sum, rtol=1e-5, atol=1e-5)
    assert jnp.allclose(out_none, ref_none, rtol=1e-5, atol=1e-5)

    print("KERNEL_OK")
</pallas_src>

<mosaic_0001>
module attributes {stable_mosaic.version = 11 : i64} {
  func.func @_ce_partial_kernel(%arg0: i32, %arg1: i32, %arg2: memref<1x4x8x128xf32, #tpu.memory_space<vmem>>, %arg3: memref<1x4x8x128xf32, #tpu.memory_space<vmem>>, %arg4: memref<1x8x128xf32, #tpu.memory_space<vmem>>) attributes {dimension_semantics = [#tpu.dimension_semantics<parallel>, #tpu.dimension_semantics<arbitrary>], iteration_bounds = array<i64: 2, 1>, scalar_prefetch = 0 : i64, scratch_operands = 0 : i64, tpu.core_type = #tpu.core_type<tc>, window_params = [{transform_indices = @transform_0, window_bounds = array<i64: 1, 4, 8, 128>}, {transform_indices = @transform_1, window_bounds = array<i64: 1, 4, 8, 128>}, {transform_indices = @transform_2, window_bounds = array<i64: 1, 8, 128>}]} {
    %c0_i32 = arith.constant 0 : i32
    %0 = arith.cmpi eq, %arg1, %c0_i32 : i32
    %1 = arith.extui %0 : i1 to i32
    %c0_i32_0 = arith.constant 0 : i32
    %2 = arith.cmpi ne, %1, %c0_i32_0 : i32
    scf.if %2 {
      %cst_16 = arith.constant 0.000000e+00 : f32
      %20 = vector.broadcast %cst_16 : f32 to vector<1x8x128xf32>
      %c0_17 = arith.constant 0 : index
      %c0_18 = arith.constant 0 : index
      %c0_19 = arith.constant 0 : index
      %21 = vector.load %arg4[%c0_17, %c0_18, %c0_19] : memref<1x8x128xf32, #tpu.memory_space<vmem>>, vector<1x8x128xf32>
      tpu.vector_store %arg4[%c0_17, %c0_18, %c0_19], %20 {strides = array<i32>} : memref<1x8x128xf32, #tpu.memory_space<vmem>>, vector<1x8x128xf32>,
    } else {
    }
    %c0 = arith.constant 0 : index
    %c0_1 = arith.constant 0 : index
    %c0_2 = arith.constant 0 : index
    %c0_3 = arith.constant 0 : index
    %3 = vector.load %arg2[%c0, %c0_1, %c0_2, %c0_3] : memref<1x4x8x128xf32, #tpu.memory_space<vmem>>, vector<1x4x8x128xf32>
    %4 = vector.shape_cast %3 : vector<1x4x8x128xf32> to vector<4x8x128xf32>
    %c0_4 = arith.constant 0 : index
    %c0_5 = arith.constant 0 : index
    %c0_6 = arith.constant 0 : index
    %c0_7 = arith.constant 0 : index
    %5 = vector.load %arg3[%c0_4, %c0_5, %c0_6, %c0_7] : memref<1x4x8x128xf32, #tpu.memory_space<vmem>>, vector<1x4x8x128xf32>
    %6 = vector.shape_cast %5 : vector<1x4x8x128xf32> to vector<4x8x128xf32>
    %cst = arith.constant 0.000000e+00 : f32
    %7 = vector.broadcast %cst : f32 to vector<4x8x128xf32>
    %8 = arith.subf %7, %6 : vector<4x8x128xf32>
    %cst_8 = arith.constant 1.000000e-16 : f32
    %9 = vector.broadcast %cst_8 : f32 to vector<4x8x128xf32>
    %10 = arith.addf %4, %9 : vector<4x8x128xf32>
    %11 = math.log %10 : vector<4x8x128xf32>
    %12 = arith.mulf %8, %11 : vector<4x8x128xf32>
    %cst_9 = arith.constant dense<0.000000e+00> : vector<8x128xf32>
    %13 = vector.multi_reduction <add>, %12, %cst_9 [0] : vector<4x8x128xf32> to vector<8x128xf32>
    %c0_10 = arith.constant 0 : index
    %c0_11 = arith.constant 0 : index
    %c0_12 = arith.constant 0 : index
    %14 = vector.load %arg4[%c0_10, %c0_11, %c0_12] : memref<1x8x128xf32, #tpu.memory_space<vmem>>, vector<1x8x128xf32>
    %15 = vector.shape_cast %14 : vector<1x8x128xf32> to vector<8x128xf32>
    %16 = arith.addf %15, %13 : vector<8x128xf32>
    %c0_13 = arith.constant 0 : index
    %c0_14 = arith.constant 0 : index
    %c0_15 = arith.constant 0 : index
    %17 = vector.load %arg4[%c0_13, %c0_14, %c0_15] : memref<1x8x128xf32, #tpu.memory_space<vmem>>, vector<1x8x128xf32>
    %18 = vector.shape_cast %17 : vector<1x8x128xf32> to vector<8x128xf32>
    %19 = vector.shape_cast %16 : vector<8x128xf32> to vector<1x8x128xf32>
    tpu.vector_store %arg4[%c0_13, %c0_14, %c0_15], %19 {strides = array<i32>} : memref<1x8x128xf32, #tpu.memory_space<vmem>>, vector<1x8x128xf32>,
    return
  }
  func.func @transform_0(%arg0: i32, %arg1: i32) -> (i32, i32, i32, i32) {
    %c0_i32 = arith.constant 0 : i32
    %c0_i32_0 = arith.constant 0 : i32
    %c0_i32_1 = arith.constant 0 : i32
    return %arg0, %c0_i32, %arg1, %c0_i32_0 : i32, i32, i32, i32
  }
  func.func @transform_1(%arg0: i32, %arg1: i32) -> (i32, i32, i32, i32) {
    %c0_i32 = arith.constant 0 : i32
    %c0_i32_0 = arith.constant 0 : i32
    %c0_i32_1 = arith.constant 0 : i32
    return %arg0, %c0_i32, %arg1, %c0_i32_0 : i32, i32, i32, i32
  }
  func.func @transform_2(%arg0: i32, %arg1: i32) -> (i32, i32, i32) {
    %c0_i32 = arith.constant 0 : i32
    %c0_i32_0 = arith.constant 0 : i32
    %c0_i32_1 = arith.constant 0 : i32
    return %arg0, %c0_i32, %c0_i32_0 : i32, i32, i32
  }
}

</mosaic_0001>

<llo_original>
// kernel: tpu_custom_call.1
$region0: #{tpu_custom_call.1}
  #allocation0 [shape = 'u32[]', space=smem, size = 0x4, offset = 0x4, fixed_abs, tag = 'smem constant byte address 0x4 - core index']
  #allocation1 [shape = 'u32[144,128]{1,0:T(1,128)}', space=vmem, size = 0x12000, scoped, tag = 'internal scratch']
  %s0 = inlined_call_operand.hbm [shape: f32[2,4,8,128], index: 0, kind: input, shape index: {}]
  %s1 = inlined_call_operand.hbm [shape: f32[2,4,8,128], index: 1, kind: input, shape index: {}]
  %s2 = inlined_call_operand.hbm [shape: f32[2,8,128], index: 2, kind: output, shape index: {}]
  %s3 = sld [smem:[#allocation0]]
  $region53: #{tpu_custom_call.1} parent=0
    _
  %s5 = ssub.s32 1, %s3
  %s6 = scalar_select 0, %s5, %s3
  $region1: #{tpu_custom_call.1} parent=0
    #allocation2 [shape = 'u8[32768]{0}', space=vmem, size = 0x8000, scoped, tag = 'input window, operand 0']
    #allocation3 [shape = 's32[2]{0}', space=sflag, size = 0x8, scoped, tag = 'scoped memory for tpu_custom_call.1']
    #allocation4 [shape = 's32[2]{0}', space=sflag, size = 0x8, scoped, tag = 'scoped memory for tpu_custom_call.1']
    #allocation5 [shape = 'u8[32768]{0}', space=vmem, size = 0x8000, scoped, tag = 'input window, operand 1']
    #allocation6 [shape = 's32[2]{0}', space=sflag, size = 0x8, scoped, tag = 'scoped memory for tpu_custom_call.1']
    #allocation7 [shape = 'u8[8192]{0}', space=vmem, size = 0x2000, scoped, tag = 'output window, operand 0']
    %7 = vsyncpa [#allocation3], 0
    %s8 = scalar_lea.sflag [#allocation3], 1
    %9 = vsyncpa %s8, 0
    %10 = vsyncpa [#allocation6], 0
    %s11 = scalar_lea.sflag [#allocation6], 1
    %12 = vsyncpa %s11, 0
    %13 = vsyncpa [#allocation4], 0
    %s14 = scalar_lea.sflag [#allocation4], 1
    %15 = vsyncpa %s14, 0
    loop: start=0, step=1, limit=4
    $region2: #{tpu_custom_call.1} parent=1 // loop_pre_header
      _
    $region3: #{tpu_custom_call.1} parent=1 // loop_header
      %s17 = sphi 0, %s21
      %p18 = scmp.ge.s32.totalorder %s17, 4
      %s24 = sphi 0, %s36
      %s25 = sphi 0, %s32
      %s26 = sphi 0, %s24
      %s27 = sphi 0, %s25
      %s28 = sphi 0, %s26
      %s29 = sphi 0, %s27
      %s41 = sphi 0, %s43
      %s44 = sphi 0, %s41
      %s45 = sphi 0, %s44
      %s61 = sphi 0, %s45
      %s69 = sphi 0, %s71
      %s72 = sphi 0, %s69
      %s73 = sphi 0, %s72
      %s89 = sphi 0, %s73
      %s95 = sphi 0, %s97
      %s98 = sphi 0, %s95
      %s99 = sphi 0, %s98
      %s115 = sphi 0, %s99
    $region4: #{tpu_custom_call.1} parent=1 // loop_header_branch
      %20 = sbr.rel (%p18) target = $region8
    $region5: #{tpu_custom_call.1} parent=1 // loop_body
      %s22 = ssub.s32 %s17, 1
      %s23 = ssub.s32 %s17, 2
      %s30 = sadd.s32 1, %s25
      %p31 = scmp.ge.s32.totalorder %s30, 1
      %s32 = scalar_select %p31, 0, %s30
      %s33 = sadd.s32 1, %s24
      %s34 = scalar_select %p31, %s33, %s24
      %p35 = scmp.ge.s32.totalorder %s34, 2
      %s36 = scalar_select %p35, 0, %s34
      %s37 = ssub.s32 %s24, %s36
      %s38 = ssub.s32 %s25, %s32
      %s39 = sor.u32 %s37, %s38
      %p40 = scmp.eq.s32.totalorder %s39, 0
      %s42 = sadd.s32 %s41, 1
      %s43 = scalar_select %p40, %s41, %s42
      %p46 = pneg %p40
      %p47 = scmp.eq.s32.totalorder %s17, 1
      %p48 = por %p46, %p47
      %p49 = scmp.ne.s32.totalorder %s41, %s44
      %p50 = scmp.eq.s32.totalorder %s17, 0
      %p51 = por %p49, %p50
      %p52 = scmp.ne.s32.totalorder %s41, %s44
      %p53 = scmp.eq.s32.totalorder %s22, 1
      %p54 = por %p52, %p53
      %p55 = scmp.ne.s32.totalorder %s44, %s45
      %p56 = scmp.eq.s32.totalorder %s22, 0
      %p57 = por %p55, %p56
      %p58 = scmp.ne.s32.totalorder %s44, %s45
      %p59 = scmp.eq.s32.totalorder %s23, 1
      %p60 = por %p58, %p59
      %p62 = scmp.ne.s32.totalorder %s45, %s61
      %p63 = scmp.eq.s32.totalorder %s23, 0
      %p64 = por %p62, %p63
      %s65 = ssub.s32 %s24, %s36
      %s66 = ssub.s32 %s25, %s32
      %s67 = sor.u32 %s65, %s66
      %p68 = scmp.eq.s32.totalorder %s67, 0
      %s70 = sadd.s32 %s69, 1
      %s71 = scalar_select %p68, %s69, %s70
      %p74 = pneg %p68
      %p75 = scmp.eq.s32.totalorder %s17, 1
      %p76 = por %p74, %p75
      %p77 = scmp.ne.s32.totalorder %s69, %s72
      %p78 = scmp.eq.s32.totalorder %s17, 0
      %p79 = por %p77, %p78
      %p80 = scmp.ne.s32.totalorder %s69, %s72
      %p81 = scmp.eq.s32.totalorder %s22, 1
      %p82 = por %p80, %p81
      %p83 = scmp.ne.s32.totalorder %s72, %s73
      %p84 = scmp.eq.s32.totalorder %s22, 0
      %p85 = por %p83, %p84
      %p86 = scmp.ne.s32.totalorder %s72, %s73
      %p87 = scmp.eq.s32.totalorder %s23, 1
      %p88 = por %p86, %p87
      %p90 = scmp.ne.s32.totalorder %s73, %s89
      %p91 = scmp.eq.s32.totalorder %s23, 0
      %p92 = por %p90, %p91
      %s93 = ssub.s32 %s24, %s36
      %p94 = scmp.eq.s32.totalorder %s93, 0
      %s96 = sadd.s32 %s95, 1
      %s97 = scalar_select %p94, %s95, %s96
      %p100 = pneg %p94
      %p101 = scmp.eq.s32.totalorder %s17, 1
      %p102 = por %p100, %p101
      %p103 = scmp.ne.s32.totalorder %s95, %s98
      %p104 = scmp.eq.s32.totalorder %s17, 0
      %p105 = por %p103, %p104
      %p106 = scmp.ne.s32.totalorder %s95, %s98
      %p107 = scmp.eq.s32.totalorder %s22, 1
      %p108 = por %p106, %p107
      %p109 = scmp.ne.s32.totalorder %s98, %s99
      %p110 = scmp.eq.s32.totalorder %s22, 0
      %p111 = por %p109, %p110
      %p112 = scmp.ne.s32.totalorder %s98, %s99
      %p113 = scmp.eq.s32.totalorder %s23, 1
      %p114 = por %p112, %p113
      %p116 = scmp.ne.s32.totalorder %s99, %s115
      %p117 = scmp.eq.s32.totalorder %s23, 0
      %p118 = por %p116, %p117
      %p119 = scmp.le.s32.totalorder 1, %s17
      %p120 = scmp.lt.s32.totalorder %s17, 3
      %p121 = pnand %p119, %p120
      %p122 = pneg %p121
      // Predicated region
      $region9: #{tpu_custom_call.1} parent=5 // pred_check
        _
      $region10: #{tpu_custom_call.1} parent=5 // pred_check_branch
        %124 = sbr.rel (%p121) target = $region12
      $region11: #{tpu_custom_call.1} parent=5 // pred_region
        %s125 = ssub.s32 %s17, 1
      $region12: #{tpu_custom_call.1} parent=5 // pred_fallthru
        _
      %p126 = scmp.lt.s32.totalorder %s17, 2
      // Predicated region
      $region13: #{tpu_custom_call.1} parent=5 // pred_check
        %p127 = pneg %p126
      $region14: #{tpu_custom_call.1} parent=5 // pred_check_branch
        %129 = sbr.rel (%p127) target = $region16
      $region15: #{tpu_custom_call.1} parent=5 // pred_region
        // Predicated region
        $region17: #{tpu_custom_call.1} parent=15 // pred_check
          %p130 = pneg %p51
        $region18: #{tpu_custom_call.1} parent=15 // pred_check_branch
          %132 = sbr.rel (%p130) target = $region20
        $region19: #{tpu_custom_call.1} parent=15 // pred_region
          %s133 = sand.u32 %s41, 1
          %s134 = scalar_lea.sflag [#allocation3], %s133
          %s135 = sand.u32 %s41, 1
          %s136 = smul.addr %s135, 32
          %s137 = scalar_lea.vmem [#allocation2], %s136
          %s139 = ssub.s32 512, 512
          %140 = vsyncadd %s134, %s139
          %s141 = smul.addr %s24, 4
          %s142 = sadd.s32 %s25, %s141
          %s143 = smul.addr %s142, 128
          %s144 = scalar_lea.hbm %s0, %s143
          %s145 = sshll.u32 %s137, 4
          %s146 = int_to_ptr.vmem [resolvable:$true] %s145
          %151 = dma.hbm_to_vmem [thread:$0]  %s144, 512, %s146, %s134, 128, 128, 8
        $region20: #{tpu_custom_call.1} parent=15 // pred_fallthru
          _
        // Predicated region
        $region21: #{tpu_custom_call.1} parent=15 // pred_check
          %p152 = pneg %p79
        $region22: #{tpu_custom_call.1} parent=15 // pred_check_branch
          %154 = sbr.rel (%p152) target = $region24
        $region23: #{tpu_custom_call.1} parent=15 // pred_region
          %s155 = sand.u32 %s69, 1
          %s156 = scalar_lea.sflag [#allocation6], %s155
          %s157 = sand.u32 %s69, 1
          %s158 = smul.addr %s157, 32
          %s159 = scalar_lea.vmem [#allocation5], %s158
          %s161 = ssub.s32 512, 512
          %162 = vsyncadd %s156, %s161
          %s163 = smul.addr %s24, 4
          %s164 = sadd.s32 %s25, %s163
          %s165 = smul.addr %s164, 128
          %s166 = scalar_lea.hbm %s1, %s165
          %s167 = sshll.u32 %s159, 4
          %s168 = int_to_ptr.vmem [resolvable:$true] %s167
          %173 = dma.hbm_to_vmem [thread:$0]  %s166, 512, %s168, %s156, 128, 128, 8
        $region24: #{tpu_custom_call.1} parent=15 // pred_fallthru
          _
      $region16: #{tpu_custom_call.1} parent=5 // pred_fallthru
        _
      %p174 = scmp.le.s32.totalorder 1, %s17
      %p175 = scmp.lt.s32.totalorder %s17, 3
      %p176 = pnand %p174, %p175
      %p177 = pneg %p176
      // Predicated region
      $region25: #{tpu_custom_call.1} parent=5 // pred_check
        _
      $region26: #{tpu_custom_call.1} parent=5 // pred_check_branch
        %179 = sbr.rel (%p176) target = $region28
      $region27: #{tpu_custom_call.1} parent=5 // pred_region
        %s180 = ssub.s32 %s17, 1
        %s181 = sand.u32 %s44, 1
        %s182 = scalar_lea.sflag [#allocation3], %s181
        %s183 = sand.u32 %s44, 1
        %s184 = smul.addr %s183, 32
        %s185 = scalar_lea.vmem [#allocation2], %s184
        // Predicated region
        $region29: #{tpu_custom_call.1} parent=27 // pred_check
          %p186 = pneg %p57
        $region30: #{tpu_custom_call.1} parent=27 // pred_check_branch
          %188 = sbr.rel (%p186) target = $region32
        $region31: #{tpu_custom_call.1} parent=27 // pred_region
          %189 = dma.done %s182, 512
        $region32: #{tpu_custom_call.1} parent=27 // pred_fallthru
          _
        %s190 = sand.u32 %s72, 1
        %s191 = scalar_lea.sflag [#allocation6], %s190
        %s192 = sand.u32 %s72, 1
        %s193 = smul.addr %s192, 32
        %s194 = scalar_lea.vmem [#allocation5], %s193
        // Predicated region
        $region33: #{tpu_custom_call.1} parent=27 // pred_check
          %p195 = pneg %p85
        $region34: #{tpu_custom_call.1} parent=27 // pred_check_branch
          %197 = sbr.rel (%p195) target = $region36
        $region35: #{tpu_custom_call.1} parent=27 // pred_region
          %198 = dma.done %s191, 512
        $region36: #{tpu_custom_call.1} parent=27 // pred_fallthru
          _
        %s199 = sand.u32 %s44, 1
        %s200 = scalar_lea.sflag [#allocation3], %s199
        %s201 = sand.u32 %s44, 1
        %s202 = smul.addr %s201, 32
        %s203 = scalar_lea.vmem [#allocation2], %s202
        %p204 = pneg %p57
        %p205 = pneg %p54
        %s206 = sand.u32 %s72, 1
        %s207 = scalar_lea.sflag [#allocation6], %s206
        %s208 = sand.u32 %s72, 1
        %s209 = smul.addr %s208, 32
        %s210 = scalar_lea.vmem [#allocation5], %s209
        %p211 = pneg %p85
        %p212 = pneg %p82
        %p213 = pneg %p111
        %p214 = pneg %p108
        %s215 = sand.u32 %s98, 1
        %s216 = scalar_lea.sflag [#allocation4], %s215
        %s217 = sand.u32 %s98, 1
        %s218 = smul.addr %s217, 8
        %s219 = scalar_lea.vmem [#allocation7], %s218
        %p220 = scmp.eq.s32.totalorder %s27, 0
        // Predicated region
        $region37: #{tpu_custom_call.1} parent=27 // pred_check
          %p221 = pneg %p220
        $region38: #{tpu_custom_call.1} parent=27 // pred_check_branch
          %223 = sbr.rel (%p221) target = $region40
        $region39: #{tpu_custom_call.1} parent=27 // pred_region
          %224 = vst [vmem:[%s219] sm:$0xff] 0.0
        $region40: #{tpu_custom_call.1} parent=27 // pred_fallthru
          _
        %v225 = vld [vmem:[%s185] sm:$0xff]
        %v226 = vld [vmem:[%s185 + $0x8] sm:$0xff]
        %v227 = vld [vmem:[%s185 + $0x10] sm:$0xff]
        %v228 = vld [vmem:[%s185 + $0x18] sm:$0xff]
        %v229 = vld [vmem:[%s194] sm:$0xff]
        %v230 = vld [vmem:[%s194 + $0x8] sm:$0xff]
        %v231 = vld [vmem:[%s194 + $0x10] sm:$0xff]
        %v232 = vld [vmem:[%s194 + $0x18] sm:$0xff]
        %v233 = vsub.f32 0.0, %v229
        %v234 = vsub.f32 0.0, %v230
        %v235 = vsub.f32 0.0, %v231
        %v236 = vsub.f32 0.0, %v232
        %v237 = vadd.f32 %v225, 1e-16
        %v238 = vadd.f32 %v226, 1e-16
        %v239 = vadd.f32 %v227, 1e-16
        %v240 = vadd.f32 %v228, 1e-16
        %v241 = vlog2.pop %v237
        %v242 = vmul.f32 %v241, 0.6931472
        %v243 = vlog2.pop %v238
        %v244 = vmul.f32 %v243, 0.6931472
        %v245 = vlog2.pop %v239
        %v246 = vmul.f32 %v245, 0.6931472
        %v247 = vlog2.pop %v240
        %v248 = vmul.f32 %v247, 0.6931472
        %v249 = vmul.f32 %v233, %v242
        %v250 = vmul.f32 %v234, %v244
        %v251 = vmul.f32 %v235, %v246
        %v252 = vmul.f32 %v236, %v248
        %v253 = vadd.f32 %v249, %v250
        %v254 = vadd.f32 %v253, %v251
        %v255 = vadd.f32 %v254, %v252
        %v256 = vld [vmem:[%s219] sm:$0xff]
        %v257 = vadd.f32 %v256, %v255
        %258 = vst [vmem:[%s219] sm:$0xff] %v257
        %s259 = sand.u32 %s98, 1
        %s260 = scalar_lea.sflag [#allocation4], %s259
        %s261 = sand.u32 %s98, 1
        %s262 = smul.addr %s261, 8
        %s263 = scalar_lea.vmem [#allocation7], %s262
        // Predicated region
        $region41: #{tpu_custom_call.1} parent=27 // pred_check
          %p264 = pneg %p108
        $region42: #{tpu_custom_call.1} parent=27 // pred_check_branch
          %266 = sbr.rel (%p264) target = $region44
        $region43: #{tpu_custom_call.1} parent=27 // pred_region
          %s268 = ssub.s32 128, 128
          %269 = vsyncadd %s260, %s268
          %s270 = smul.addr %s26, 128
          %s271 = scalar_lea.hbm %s2, %s270
          %s273 = sshll.u32 %s263, 4
          %s274 = int_to_ptr.vmem [resolvable:$true] %s273
          %276 = dma.vmem_to_hbm [thread:$0]  %s274, 128, %s271, %s260
        $region44: #{tpu_custom_call.1} parent=27 // pred_fallthru
          _
      $region28: #{tpu_custom_call.1} parent=5 // pred_fallthru
        _
      %p277 = scmp.le.s32.totalorder 2, %s17
      // Predicated region
      $region45: #{tpu_custom_call.1} parent=5 // pred_check
        %p278 = pneg %p277
      $region46: #{tpu_custom_call.1} parent=5 // pred_check_branch
        %280 = sbr.rel (%p278) target = $region48
      $region47: #{tpu_custom_call.1} parent=5 // pred_region
        %s281 = ssub.s32 %s17, 2
        // Predicated region
        $region49: #{tpu_custom_call.1} parent=47 // pred_check
          %p282 = pneg %p114
        $region50: #{tpu_custom_call.1} parent=47 // pred_check_branch
          %284 = sbr.rel (%p282) target = $region52
        $region51: #{tpu_custom_call.1} parent=47 // pred_region
          %s285 = sand.u32 %s99, 1
          %s286 = scalar_lea.sflag [#allocation4], %s285
          %s287 = sand.u32 %s99, 1
          %s288 = smul.addr %s287, 8
          %s289 = scalar_lea.vmem [#allocation7], %s288
          %290 = dma.done %s286, 128
        $region52: #{tpu_custom_call.1} parent=47 // pred_fallthru
          _
      $region48: #{tpu_custom_call.1} parent=5 // pred_fallthru
        _
    $region6: #{tpu_custom_call.1} parent=1 // loop_footer
      %s21 = sadd.s32 1, %s17
    $region7: #{tpu_custom_call.1} parent=1 // loop_footer_branch
      %16 = sbr.rel target = $region3
    $region8: #{tpu_custom_call.1} parent=1 // loop_exit
      _
    %291 = vsyncpa [#allocation3], 1
    %s292 = scalar_lea.sflag [#allocation3], 1
    %293 = vsyncpa %s292, 1
    %294 = vsyncpa [#allocation6], 1
    %s295 = scalar_lea.sflag [#allocation6], 1
    %296 = vsyncpa %s295, 1
    %297 = vsyncpa [#allocation4], 1
    %s298 = scalar_lea.sflag [#allocation4], 1
    %299 = vsyncpa %s298, 1

</llo_original>
